<compile_context>
chip_gen: v6e
topology: v6e:2x2x1
jax: 0.10.0
libtpu: 0.0.40
codegen_flags: <defaults>
</compile_context>

<pallas_src>
import functools

import jax
import jax.numpy as jnp
from jax.experimental import pallas as pl
from jax.experimental.pallas import tpu as pltpu


def _round_up(x, m):
    return ((x + m - 1) // m) * m


# --------------------------------------------------------------------------- #
# Kernel
# --------------------------------------------------------------------------- #
def _causal_encoder_kernel(h_ref, w1_ref, b1_ref, w2_ref, b2_ref, out_ref):
    """One row tile of the fused two-branch MLP:

        z   = h @ W1_packed + b1_packed          (f32 accumulate)
        a   = SiLU(z)
        out = a @ W2_blockdiag + b2_packed       (f32 accumulate)
    """
    h = h_ref[...]                       # keep native dtype (bf16 stays bf16)
    z = jnp.dot(h, w1_ref[...], preferred_element_type=jnp.float32) + b1_ref[...]
    a = z * jax.nn.sigmoid(z)            # SiLU in f32 (EUP)
    a = a.astype(w2_ref.dtype)           # bf16-native second matmul if weights are bf16
    o = jnp.dot(a, w2_ref[...], preferred_element_type=jnp.float32) + b2_ref[...]
    out_ref[...] = o.astype(out_ref.dtype)


# --------------------------------------------------------------------------- #
# Parameter packing (done once, outside the jitted forward)
# --------------------------------------------------------------------------- #
def pack_params(params, dtype=None):
    """Pack tr/re branch weights into fused, lane-padded matrices.

    Returns (w1, b1, w2, b2, code_dim) where
      w1: (hidden, K1P)  cols [0:hid2]=W1t, [hid2:2*hid2]=W1r, rest 0
      w2: (K1P,   K2P)   block diag: W2t -> [0:hid2, 0:code], W2r -> [hid2:2h2, code:2*code]
      K1P = round_up(2*hid2, 128), K2P = round_up(2*code_dim, 128)
    Biases stay f32 (added to the f32 accumulator exactly).
    """
    w1t, b1t, w2t, b2t = params["tr"]
    w1r, b1r, w2r, b2r = params["re"]
    hidden, hid2 = w1t.shape
    code = w2t.shape[1]
    if dtype is None:
        dtype = w1t.dtype

    k1p = max(_round_up(2 * hid2, 128), 128)
    k2p = max(_round_up(2 * code, 128), 128)

    w1 = jnp.zeros((hidden, k1p), dtype)
    w1 = w1.at[:, :hid2].set(w1t.astype(dtype))
    w1 = w1.at[:, hid2:2 * hid2].set(w1r.astype(dtype))

    b1 = jnp.zeros((1, k1p), jnp.float32)
    b1 = b1.at[:, :hid2].set(b1t.reshape(1, -1).astype(jnp.float32))
    b1 = b1.at[:, hid2:2 * hid2].set(b1r.reshape(1, -1).astype(jnp.float32))

    w2 = jnp.zeros((k1p, k2p), dtype)
    w2 = w2.at[:hid2, :code].set(w2t.astype(dtype))
    w2 = w2.at[hid2:2 * hid2, code:2 * code].set(w2r.astype(dtype))

    b2 = jnp.zeros((1, k2p), jnp.float32)
    b2 = b2.at[:, :code].set(b2t.reshape(1, -1).astype(jnp.float32))
    b2 = b2.at[:, code:2 * code].set(b2r.reshape(1, -1).astype(jnp.float32))

    return w1, b1, w2, b2, code


# --------------------------------------------------------------------------- #
# Forward wrapper
# --------------------------------------------------------------------------- #
@functools.partial(jax.jit, static_argnames=("code_dim", "tile_n"))
def causal_encoder_forward(h, w1, b1, w2, b2, *, code_dim, tile_n=512):
    """h: (..., hidden). Returns {'tr_features', 're_features'} of shape (..., code_dim)."""
    orig_shape = h.shape
    hidden = orig_shape[-1]
    h2 = h.reshape(-1, hidden)
    n_rows = h2.shape[0]

    # Large row tile, but never larger than the (8-rounded) row count.
    tile = min(tile_n, _round_up(n_rows, 8))
    padded = _round_up(n_rows, tile)
    if padded != n_rows:
        h2 = jnp.pad(h2, ((0, padded - n_rows), (0, 0)))

    k1p = w1.shape[1]
    k2p = w2.shape[1]
    grid = (padded // tile,)

    itemsize_h = jnp.dtype(h.dtype).itemsize
    itemsize_w = jnp.dtype(w1.dtype).itemsize

    # VMEM budget: double-buffered h/out tiles + (double-buffered) resident weights.
    needed = (2 * (tile * hidden + tile * k2p) * itemsize_h
              + 2 * (hidden * k1p + k1p * k2p) * itemsize_w
              + 2 * (k1p + k2p) * 4
              + (4 << 20))  # headroom
    vmem_limit = int(min(max(needed, 32 << 20), 64 << 20))

    cost = pl.CostEstimate(
        flops=2 * padded * (hidden * k1p + k1p * k2p),
        transcendentals=padded * k1p,
        bytes_accessed=(padded * hidden + padded * k2p) * itemsize_h
        + (hidden * k1p + k1p * k2p) * itemsize_w
        + (k1p + k2p) * 4,
    )

    out = pl.pallas_call(
        _causal_encoder_kernel,
        grid=grid,
        in_specs=[
            pl.BlockSpec((tile, hidden), lambda i: (i, 0)),
            pl.BlockSpec((hidden, k1p), lambda i: (0, 0)),
            pl.BlockSpec((1, k1p), lambda i: (0, 0)),
            pl.BlockSpec((k1p, k2p), lambda i: (0, 0)),
            pl.BlockSpec((1, k2p), lambda i: (0, 0)),
        ],
        out_specs=pl.BlockSpec((tile, k2p), lambda i: (i, 0)),
        out_shape=jax.ShapeDtypeStruct((padded, k2p), h.dtype),
        compiler_params=pltpu.CompilerParams(
            dimension_semantics=("parallel",),
            vmem_limit_bytes=vmem_limit,
        ),
        cost_estimate=cost,
    )(h2, w1, b1, w2, b2)

    out = out[:n_rows]
    out_shape = orig_shape[:-1] + (code_dim,)
    return {
        "tr_features": out[:, :code_dim].reshape(out_shape),
        "re_features": out[:, code_dim:2 * code_dim].reshape(out_shape),
    }


# --------------------------------------------------------------------------- #
# Init + pure-JAX reference
# --------------------------------------------------------------------------- #
def init_params(key, hidden_state_dim, code_dim, dtype=jnp.float32):
    """Deterministic init matching MLP(hidden, code, [hidden//2], SiLU) per branch."""
    hid2 = hidden_state_dim // 2
    ks = jax.random.split(key, 8)
    scale1 = 1.0 / jnp.sqrt(hidden_state_dim)
    scale2 = 1.0 / jnp.sqrt(hid2)

    def branch(k0, k1, k2, k3):
        w1 = (jax.random.normal(k0, (hidden_state_dim, hid2)) * scale1).astype(dtype)
        b1 = (jax.random.normal(k1, (1, hid2)) * 0.01).astype(dtype)
        w2 = (jax.random.normal(k2, (hid2, code_dim)) * scale2).astype(dtype)
        b2 = (jax.random.normal(k3, (1, code_dim)) * 0.01).astype(dtype)
        return (w1, b1, w2, b2)

    return {
        "tr": branch(ks[0], ks[1], ks[2], ks[3]),
        "re": branch(ks[4], ks[5], ks[6], ks[7]),
    }


def reference_forward(h, params):
    """Pure-JAX reference of the PyTorch module for validation."""
    def mlp(x, w1, b1, w2, b2):
        z = x @ w1 + b1
        a = z * jax.nn.sigmoid(z)
        return a @ w2 + b2

    return {
        "tr_features": mlp(h, *params["tr"]),
        "re_features": mlp(h, *params["re"]),
    }


# --------------------------------------------------------------------------- #
# Demo / self-test
# --------------------------------------------------------------------------- #
if __name__ == "__main__":
    # Small shapes: batch=2, seq=8, hidden_state_dim=32, code_dim=16
    B, S, HIDDEN, CODE = 2, 8, 32, 16

    key = jax.random.PRNGKey(0)
    k_h, k_p = jax.random.split(key)
    h = jax.random.normal(k_h, (B, S, HIDDEN), dtype=jnp.float32)
    params = init_params(k_p, HIDDEN, CODE)

    w1, b1, w2, b2, code_dim = pack_params(params)

    out = causal_encoder_forward(h, w1, b1, w2, b2, code_dim=code_dim, tile_n=512)
    jax.block_until_ready(out)

    ref = reference_forward(h, params)
    assert out["tr_features"].shape == (B, S, CODE)
    assert out["re_features"].shape == (B, S, CODE)
    assert jnp.allclose(out["tr_features"], ref["tr_features"], atol=1e-5, rtol=1e-5)
    assert jnp.allclose(out["re_features"], ref["re_features"], atol=1e-5, rtol=1e-5)

    # Also exercise a row count that is NOT a multiple of the tile (padding path).
    h_odd = jax.random.normal(k_h, (3, 7, HIDDEN), dtype=jnp.float32)
    out_odd = causal_encoder_forward(h_odd, w1, b1, w2, b2, code_dim=code_dim, tile_n=512)
    jax.block_until_ready(out_odd)
    ref_odd = reference_forward(h_odd, params)
    assert jnp.allclose(out_odd["tr_features"], ref_odd["tr_features"], atol=1e-5, rtol=1e-5)
    assert jnp.allclose(out_odd["re_features"], ref_odd["re_features"], atol=1e-5, rtol=1e-5)

    print("KERNEL_OK")
</pallas_src>

<mosaic_0001>
module attributes {stable_mosaic.version = 11 : i64} {
  func.func @_causal_encoder_kernel(%arg0: i32, %arg1: memref<16x32xf32, #tpu.memory_space<vmem>>, %arg2: memref<32x128xf32, #tpu.memory_space<vmem>>, %arg3: memref<1x128xf32, #tpu.memory_space<vmem>>, %arg4: memref<128x128xf32, #tpu.memory_space<vmem>>, %arg5: memref<1x128xf32, #tpu.memory_space<vmem>>, %arg6: memref<16x128xf32, #tpu.memory_space<vmem>>) attributes {dimension_semantics = [#tpu.dimension_semantics<parallel>], iteration_bounds = array<i64: 1>, scalar_prefetch = 0 : i64, scratch_operands = 0 : i64, tpu.core_type = #tpu.core_type<tc>, window_params = [{transform_indices = @transform_0, window_bounds = array<i64: 16, 32>}, {pipeline_mode = #tpu.pipeline_mode<synchronous>, transform_indices = @transform_1, window_bounds = array<i64: 32, 128>}, {pipeline_mode = #tpu.pipeline_mode<synchronous>, transform_indices = @transform_2, window_bounds = array<i64: 1, 128>}, {pipeline_mode = #tpu.pipeline_mode<synchronous>, transform_indices = @transform_3, window_bounds = array<i64: 128, 128>}, {pipeline_mode = #tpu.pipeline_mode<synchronous>, transform_indices = @transform_4, window_bounds = array<i64: 1, 128>}, {transform_indices = @transform_5, window_bounds = array<i64: 16, 128>}]} {
    %c0 = arith.constant 0 : index
    %c0_0 = arith.constant 0 : index
    %0 = vector.load %arg1[%c0, %c0_0] : memref<16x32xf32, #tpu.memory_space<vmem>>, vector<16x32xf32>
    %c0_1 = arith.constant 0 : index
    %c0_2 = arith.constant 0 : index
    %1 = vector.load %arg2[%c0_1, %c0_2] : memref<32x128xf32, #tpu.memory_space<vmem>>, vector<32x128xf32>
    %cst = arith.constant dense<0.000000e+00> : vector<16x128xf32>
    %2 = tpu.matmul %0, %1, %cst {dimension_numbers = #tpu.dot_dimension_numbers<[1], [0], [0], [1], [0, 0, 1, 1], [], []>} : vector<16x32xf32>, vector<32x128xf32>, vector<16x128xf32> -> vector<16x128xf32>
    %c0_3 = arith.constant 0 : index
    %c0_4 = arith.constant 0 : index
    %3 = vector.load %arg3[%c0_3, %c0_4] : memref<1x128xf32, #tpu.memory_space<vmem>>, vector<1x128xf32>
    %4 = vector.broadcast %3 : vector<1x128xf32> to vector<16x128xf32>
    %5 = arith.addf %2, %4 : vector<16x128xf32>
    %6 = arith.negf %5 : vector<16x128xf32>
    %7 = math.exp %6 : vector<16x128xf32>
    %cst_5 = arith.constant 1.000000e+00 : f32
    %8 = vector.broadcast %cst_5 : f32 to vector<16x128xf32>
    %9 = arith.addf %8, %7 : vector<16x128xf32>
    %10 = arith.divf %8, %9 : vector<16x128xf32>
    %11 = arith.mulf %5, %10 : vector<16x128xf32>
    %c0_6 = arith.constant 0 : index
    %c0_7 = arith.constant 0 : index
    %12 = vector.load %arg4[%c0_6, %c0_7] : memref<128x128xf32, #tpu.memory_space<vmem>>, vector<128x128xf32>
    %cst_8 = arith.constant dense<0.000000e+00> : vector<16x128xf32>
    %13 = tpu.matmul %11, %12, %cst_8 {dimension_numbers = #tpu.dot_dimension_numbers<[1], [0], [0], [1], [0, 0, 1, 1], [], []>} : vector<16x128xf32>, vector<128x128xf32>, vector<16x128xf32> -> vector<16x128xf32>
    %c0_9 = arith.constant 0 : index
    %c0_10 = arith.constant 0 : index
    %14 = vector.load %arg5[%c0_9, %c0_10] : memref<1x128xf32, #tpu.memory_space<vmem>>, vector<1x128xf32>
    %15 = vector.broadcast %14 : vector<1x128xf32> to vector<16x128xf32>
    %16 = arith.addf %13, %15 : vector<16x128xf32>
    %c0_11 = arith.constant 0 : index
    %c0_12 = arith.constant 0 : index
    %17 = vector.load %arg6[%c0_11, %c0_12] : memref<16x128xf32, #tpu.memory_space<vmem>>, vector<16x128xf32>
    tpu.vector_store %arg6[%c0_11, %c0_12], %16 {strides = array<i32>} : memref<16x128xf32, #tpu.memory_space<vmem>>, vector<16x128xf32>,
    return
  }
  func.func @transform_0(%arg0: i32) -> (i32, i32) {
    %c0_i32 = arith.constant 0 : i32
    %c0_i32_0 = arith.constant 0 : i32
    return %arg0, %c0_i32 : i32, i32
  }
  func.func @transform_1(%arg0: i32) -> (i32, i32) {
    %c0_i32 = arith.constant 0 : i32
    %c0_i32_0 = arith.constant 0 : i32
    %c0_i32_1 = arith.constant 0 : i32
    return %c0_i32, %c0_i32_0 : i32, i32
  }
  func.func @transform_2(%arg0: i32) -> (i32, i32) {
    %c0_i32 = arith.constant 0 : i32
    %c0_i32_0 = arith.constant 0 : i32
    %c0_i32_1 = arith.constant 0 : i32
    return %c0_i32, %c0_i32_0 : i32, i32
  }
  func.func @transform_3(%arg0: i32) -> (i32, i32) {
    %c0_i32 = arith.constant 0 : i32
    %c0_i32_0 = arith.constant 0 : i32
    %c0_i32_1 = arith.constant 0 : i32
    return %c0_i32, %c0_i32_0 : i32, i32
  }
  func.func @transform_4(%arg0: i32) -> (i32, i32) {
    %c0_i32 = arith.constant 0 : i32
    %c0_i32_0 = arith.constant 0 : i32
    %c0_i32_1 = arith.constant 0 : i32
    return %c0_i32, %c0_i32_0 : i32, i32
  }
  func.func @transform_5(%arg0: i32) -> (i32, i32) {
    %c0_i32 = arith.constant 0 : i32
    %c0_i32_0 = arith.constant 0 : i32
    return %arg0, %c0_i32 : i32, i32
  }
}

</mosaic_0001>

<llo_original>
// kernel: causal_encoder_forward.1
$region0: #{causal_encoder_forward.1}
  #allocation0 [shape = 'u32[]', space=smem, size = 0x4, offset = 0x4, fixed_abs, tag = 'smem constant byte address 0x4 - core index']
  #allocation1 [shape = 'u32[144,128]{1,0:T(1,128)}', space=vmem, size = 0x12000, scoped, tag = 'internal scratch']
  %s0 = inlined_call_operand.hbm [shape: f32[16,32], index: 0, kind: input, shape index: {}]
  %s1 = inlined_call_operand.hbm [shape: f32[32,128], index: 1, kind: input, shape index: {}]
  %s2 = inlined_call_operand.vmem [shape: f32[1,128], index: 2, kind: input, shape index: {}]
  %s3 = inlined_call_operand.hbm [shape: f32[128,128], index: 3, kind: input, shape index: {}]
  %s4 = inlined_call_operand.vmem [shape: f32[1,128], index: 4, kind: input, shape index: {}]
  %s5 = inlined_call_operand.vmem [shape: f32[16,128], index: 5, kind: output, shape index: {}]
  %s6 = sld [smem:[#allocation0]]
  $region42: #{causal_encoder_forward.1} parent=0
    _
  %s8 = ssub.s32 1, %s6
  %s9 = scalar_select 0, %s8, %s6
  $region1: #{causal_encoder_forward.1} parent=0
    #allocation2 [shape = 'u8[8192]{0}', space=vmem, size = 0x2000, scoped, tag = 'input window, operand 0, single buffered']
    #allocation3 [shape = 's32[1]{0}', space=sflag, size = 0x4, scoped, tag = 'scoped memory for causal_encoder_forward.1']
    #allocation4 [shape = 'u8[16384]{0}', space=vmem, size = 0x4000, scoped, tag = 'input window, operand 1, single buffered']
    #allocation5 [shape = 's32[1]{0}', space=sflag, size = 0x4, scoped, tag = 'scoped memory for causal_encoder_forward.1']
    #allocation6 [shape = 'u8[65536]{0}', space=vmem, size = 0x10000, scoped, tag = 'input window, operand 3, single buffered']
    %10 = vsyncpa [#allocation3], 0
    %11 = vsyncpa [#allocation5], 0
    // Predicated region
    $region2: #{causal_encoder_forward.1} parent=1 // pred_check
      _
    $region3: #{causal_encoder_forward.1} parent=1 // pred_check_branch
      %13 = sbr.rel (0) target = $region5
    $region4: #{causal_encoder_forward.1} parent=1 // pred_region
      %s15 = ssub.s32 256, 256
      %16 = vsyncadd [#allocation3], %s15
      %s17 = sshll.u32 [#allocation2], 4
      %s18 = int_to_ptr.vmem [resolvable:$true] %s17
      %23 = dma.hbm_to_vmem [thread:$0]  %s0, 256, %s18, [#allocation3], 128, 128, 8
    $region5: #{causal_encoder_forward.1} parent=1 // pred_fallthru
      _
    // Predicated region
    $region6: #{causal_encoder_forward.1} parent=1 // pred_check
      _
    $region7: #{causal_encoder_forward.1} parent=1 // pred_check_branch
      %25 = sbr.rel (0) target = $region9
    $region8: #{causal_encoder_forward.1} parent=1 // pred_region
      %s27 = ssub.s32 512, 512
      %28 = vsyncadd [#allocation5], %s27
      %s29 = sshll.u32 [#allocation4], 4
      %s30 = int_to_ptr.vmem [resolvable:$true] %s29
      %35 = dma.hbm_to_vmem [thread:$0]  %s1, 512, %s30, [#allocation5], 128, 128, 8
    $region9: #{causal_encoder_forward.1} parent=1 // pred_fallthru
      _
    // Predicated region
    $region10: #{causal_encoder_forward.1} parent=1 // pred_check
      _
    $region11: #{causal_encoder_forward.1} parent=1 // pred_check_branch
      %37 = sbr.rel (0) target = $region13
    $region12: #{causal_encoder_forward.1} parent=1 // pred_region
      _
    $region13: #{causal_encoder_forward.1} parent=1 // pred_fallthru
      _
    // Predicated region
    $region14: #{causal_encoder_forward.1} parent=1 // pred_check
      _
    $region15: #{causal_encoder_forward.1} parent=1 // pred_check_branch
      %39 = sbr.rel (0) target = $region17
    $region16: #{causal_encoder_forward.1} parent=1 // pred_region
      %s41 = ssub.s32 2048, 2048
      %42 = vsyncadd [#allocation5], %s41
      %s43 = sshll.u32 [#allocation6], 4
      %s44 = int_to_ptr.vmem [resolvable:$true] %s43
      %49 = dma.hbm_to_vmem [thread:$0]  %s3, 2048, %s44, [#allocation5], 128, 128, 8
    $region17: #{causal_encoder_forward.1} parent=1 // pred_fallthru
      _
    // Predicated region
    $region18: #{causal_encoder_forward.1} parent=1 // pred_check
      _
    $region19: #{causal_encoder_forward.1} parent=1 // pred_check_branch
      %51 = sbr.rel (0) target = $region21
    $region20: #{causal_encoder_forward.1} parent=1 // pred_region
      _
    $region21: #{causal_encoder_forward.1} parent=1 // pred_fallthru
      _
    // Predicated region
    $region22: #{causal_encoder_forward.1} parent=1 // pred_check
      _
    $region23: #{causal_encoder_forward.1} parent=1 // pred_check_branch
      %53 = sbr.rel (0) target = $region25
    $region24: #{causal_encoder_forward.1} parent=1 // pred_region
      %54 = dma.done [#allocation3], 256
    $region25: #{causal_encoder_forward.1} parent=1 // pred_fallthru
      _
    // Predicated region
    $region26: #{causal_encoder_forward.1} parent=1 // pred_check
      _
    $region27: #{causal_encoder_forward.1} parent=1 // pred_check_branch
      %56 = sbr.rel (0) target = $region29
    $region28: #{causal_encoder_forward.1} parent=1 // pred_region
      %57 = dma.done [#allocation5], 512
    $region29: #{causal_encoder_forward.1} parent=1 // pred_fallthru
      _
    // Predicated region
    $region30: #{causal_encoder_forward.1} parent=1 // pred_check
      _
    $region31: #{causal_encoder_forward.1} parent=1 // pred_check_branch
      %59 = sbr.rel (0) target = $region33
    $region32: #{causal_encoder_forward.1} parent=1 // pred_region
      %60 = dma.done [#allocation5], 2048
    $region33: #{causal_encoder_forward.1} parent=1 // pred_fallthru
      _
    %v61 = vld [vmem:[#allocation2] sm:$0xff]
    %v62 = vld [vmem:[#allocation2 + $0x8] sm:$0xff]
    %v63 = vld [vmem:[#allocation4] sm:$0xff]
    %v64 = vld [vmem:[#allocation4 + $0x8] sm:$0xff]
    %v65 = vld [vmem:[#allocation4 + $0x10] sm:$0xff]
    %v66 = vld [vmem:[#allocation4 + $0x18] sm:$0xff]
    %v67 = vld [vmem:[%s2] sm:$0x1]
    %v69 = vlaneseq
    %v70 = vshrl.u32 %v69, 7
    %v71 = vsub.s32 0, %v70
    %v72 = vrot.slane %v67, %v71
    %vm74 = vcmask 261120
    %v76 = vsel %vm74, %v61, 0
    %v79 = vsel %vm74, %v62, 0
    %81 = vmatprep.subr.mxu0 0.0
    %82 = vmatpush1.msra.mxu0 0.0
    %83 = vmatprep.subr.mxu0 0.0
    %84 = vmatpush1.msra.mxu0 0.0
    %85 = vmatprep.subr.mxu0 0.0
    %86 = vmatpush1.msra.mxu0 0.0
    %87 = vmatprep.subr.mxu0 0.0
    %88 = vmatpush1.msra.mxu0 0.0
    %89 = vmatprep.subr.mxu0 0.0
    %90 = vmatpush1.msra.mxu0 0.0
    %91 = vmatprep.subr.mxu0 0.0
    %92 = vmatpush1.msra.mxu0 0.0
    %93 = vmatprep.subr.mxu0 0.0
    %94 = vmatpush1.msra.mxu0 0.0
    %95 = vmatprep.subr.mxu0 0.0
    %96 = vmatpush1.msra.mxu0 0.0
    %97 = vmatprep.subr.mxu0 0.0
    %98 = vmatpush1.msra.mxu0 0.0
    %99 = vmatprep.subr.mxu0 0.0
    %100 = vmatpush1.msra.mxu0 0.0
    %101 = vmatprep.subr.mxu0 0.0
    %102 = vmatpush1.msra.mxu0 0.0
    %103 = vmatprep.subr.mxu0 0.0
    %104 = vmatpush1.msra.mxu0 0.0
    %105 = vmatprep.subr.mxu0 0.0
    %106 = vmatpush1.msra.mxu0 %v66
    %107 = vmatprep.subr.mxu0 0.0
    %108 = vmatpush1.msra.mxu0 %v65
    %109 = vmatprep.subr.mxu0 0.0
    %110 = vmatpush1.msra.mxu0 %v64
    %111 = vmatprep.subr.mxu0 0.0
    %112 = vmatpush1.msra.mxu0 %v63
    %113 = vmatprep.subr.mxu0 0.0
    %114 = vmatpush2.msra.mxu0 0.0
    %115 = vmatprep.subr.mxu0 0.0
    %116 = vmatpush2.msra.mxu0 0.0
    %117 = vmatprep.subr.mxu0 0.0
    %118 = vmatpush2.msra.mxu0 0.0
    %119 = vmatprep.subr.mxu0 0.0
    %120 = vmatpush2.msra.mxu0 0.0
    %121 = vmatprep.subr.mxu0 0.0
    %122 = vmatpush2.msra.mxu0 0.0
    %123 = vmatprep.subr.mxu0 0.0
    %124 = vmatpush2.msra.mxu0 0.0
    %125 = vmatprep.subr.mxu0 0.0
    %126 = vmatpush2.msra.mxu0 0.0
    %127 = vmatprep.subr.mxu0 0.0
    %128 = vmatpush2.msra.mxu0 0.0
    %129 = vmatprep.subr.mxu0 0.0
    %130 = vmatpush2.msra.mxu0 0.0
    %131 = vmatprep.subr.mxu0 0.0
    %132 = vmatpush2.msra.mxu0 0.0
    %133 = vmatprep.subr.mxu0 0.0
    %134 = vmatpush2.msra.mxu0 0.0
    %135 = vmatprep.subr.mxu0 0.0
    %136 = vmatpush2.msra.mxu0 0.0
    %137 = vmatprep.subr.mxu0 0.0
    %138 = vmatpush2.msra.mxu0 0.0
    %139 = vmatprep.subr.mxu0 0.0
    %140 = vmatpush2.msra.mxu0 0.0
    %141 = vmatprep.subr.mxu0 0.0
    %142 = vmatpush2.msra.mxu0 0.0
    %143 = vmatprep.subr.mxu0 0.0
    %144 = vmatpush2.msra.mxu0 0.0
    %145 = vmatprep.mubr.f32.mxu0 0.0
    %146 = vmatmul.mubr.f32.gmra.mxu0 %v76
    %v147 = vpop.f32.mrf.mxu0
    %v148 = vadd.f32 %v72, %v147
    %v149 = vpop.f32.mrf.mxu0
    %150 = vmatprep.mubr.f32.mxu0 0.0
    %151 = vmatmul.mubr.f32.gmra.mxu0 %v79
    %v152 = vpop.f32.mrf.mxu0
    %v153 = vadd.f32 %v72, %v152
    %v154 = vpop.f32.mrf.mxu0
    %155 = vdwg.mxu0
    %v156 = vxor.u32 %v148, 2147483648
    %v157 = vxor.u32 %v153, 2147483648
    %v158 = vmul.f32 %v156, 1.442695
    %v159 = vpow.pop %v158
    %v160 = vmul.f32 %v157, 1.442695
    %v161 = vpow.pop %v160
    %v162 = vadd.f32 %v159, 1.0
    %v163 = vadd.f32 %v161, 1.0
    %v164 = vrcp.pop %v162
    %v165 = vmul.f32 1.0, %v164
    %v166 = vrcp.pop %v163
    %v167 = vmul.f32 1.0, %v166
    %v168 = vmul.f32 %v148, %v165
    %v169 = vmul.f32 %v153, %v167
    %v170 = vld [vmem:[#allocation6] sm:$0xff]
    %v171 = vld [vmem:[#allocation6 + $0x8] sm:$0xff]
    %v172 = vld [vmem:[#allocation6 + $0x10] sm:$0xff]
    %v173 = vld [vmem:[#allocation6 + $0x18] sm:$0xff]
    %v174 = vld [vmem:[#allocation6 + $0x20] sm:$0xff]
    %v175 = vld [vmem:[#allocation6 + $0x28] sm:$0xff]
    %v176 = vld [vmem:[#allocation6 + $0x30] sm:$0xff]
    %v177 = vld [vmem:[#allocation6 + $0x38] sm:$0xff]
    %v178 = vld [vmem:[#allocation6 + $0x40] sm:$0xff]
    %v179 = vld [vmem:[#allocation6 + $0x48] sm:$0xff]
    %v180 = vld [vmem:[#allocation6 + $0x50] sm:$0xff]
    %v181 = vld [vmem:[#allocation6 + $0x58] sm:$0xff]
    %v182 = vld [vmem:[#allocation6 + $0x60] sm:$0xff]
    %v183 = vld [vmem:[#allocation6 + $0x68] sm:$0xff]
    %v184 = vld [vmem:[#allocation6 + $0x70] sm:$0xff]
    %v185 = vld [vmem:[#allocation6 + $0x78] sm:$0xff]
    %v186 = vld [vmem:[%s4] sm:$0x1]
    %v188 = vlaneseq
    %v189 = vshrl.u32 %v188, 7
    %v190 = vsub.s32 0, %v189
    %v191 = vrot.slane %v186, %v190
    %193 = vmatprep.subr.mxu0 0.0
    %194 = vmatpush1.msra.mxu0 %v185
    %195 = vmatprep.subr.mxu0 0.0
    %196 = vmatpush1.msra.mxu0 %v184
    %197 = vmatprep.subr.mxu0 0.0
    %198 = vmatpush1.msra.mxu0 %v183
    %199 = vmatprep.subr.mxu0 0.0
    %200 = vmatpush1.msra.mxu0 %v182
    %201 = vmatprep.subr.mxu0 0.0
    %202 = vmatpush1.msra.mxu0 %v181
    %203 = vmatprep.subr.mxu0 0.0
    %204 = vmatpush1.msra.mxu0 %v180
    %205 = vmatprep.subr.mxu0 0.0
    %206 = vmatpush1.msra.mxu0 %v179
    %207 = vmatprep.subr.mxu0 0.0
    %208 = vmatpush1.msra.mxu0 %v178
    %209 = vmatprep.subr.mxu0 0.0
    %210 = vmatpush1.msra.mxu0 %v177
    %211 = vmatprep.subr.mxu0 0.0
    %212 = vmatpush1.msra.mxu0 %v176
    %213 = vmatprep.subr.mxu0 0.0
    %214 = vmatpush1.msra.mxu0 %v175
    %215 = vmatprep.subr.mxu0 0.0
    %216 = vmatpush1.msra.mxu0 %v174
    %217 = vmatprep.subr.mxu0 0.0
    %218 = vmatpush1.msra.mxu0 %v173
    %219 = vmatprep.subr.mxu0 0.0
    %220 = vmatpush1.msra.mxu0 %v172
    %221 = vmatprep.subr.mxu0 0.0
    %222 = vmatpush1.msra.mxu0 %v171
    %223 = vmatprep.subr.mxu0 0.0
    %224 = vmatpush1.msra.mxu0 %v170
    %225 = vmatprep.subr.mxu0 0.0
    %226 = vmatpush2.msra.mxu0 0.0
    %227 = vmatprep.subr.mxu0 0.0
    %228 = vmatpush2.msra.mxu0 0.0
    %229 = vmatprep.subr.mxu0 0.0
    %230 = vmatpush2.msra.mxu0 0.0
    %231 = vmatprep.subr.mxu0 0.0
    %232 = vmatpush2.msra.mxu0 0.0
    %233 = vmatprep.subr.mxu0 0.0
    %234 = vmatpush2.msra.mxu0 0.0
    %235 = vmatprep.subr.mxu0 0.0
    %236 = vmatpush2.msra.mxu0 0.0
    %237 = vmatprep.subr.mxu0 0.0
    %238 = vmatpush2.msra.mxu0 0.0
    %239 = vmatprep.subr.mxu0 0.0
    %240 = vmatpush2.msra.mxu0 0.0
    %241 = vmatprep.subr.mxu0 0.0
    %242 = vmatpush2.msra.mxu0 0.0
    %243 = vmatprep.subr.mxu0 0.0
    %244 = vmatpush2.msra.mxu0 0.0
    %245 = vmatprep.subr.mxu0 0.0
    %246 = vmatpush2.msra.mxu0 0.0
    %247 = vmatprep.subr.mxu0 0.0
    %248 = vmatpush2.msra.mxu0 0.0
    %249 = vmatprep.subr.mxu0 0.0
    %250 = vmatpush2.msra.mxu0 0.0
    %251 = vmatprep.subr.mxu0 0.0
    %252 = vmatpush2.msra.mxu0 0.0
    %253 = vmatprep.subr.mxu0 0.0
    %254 = vmatpush2.msra.mxu0 0.0
    %255 = vmatprep.subr.mxu0 0.0
    %256 = vmatpush2.msra.mxu0 0.0
    %257 = vmatprep.mubr.f32.mxu0 0.0
    %258 = vmatmul.mubr.f32.gmra.mxu0 %v168
    %v259 = vpop.f32.mrf.mxu0
    %v260 = vadd.f32 %v191, %v259
    %v261 = vpop.f32.mrf.mxu0
    %262 = vmatprep.mubr.f32.mxu0 0.0
    %263 = vmatmul.mubr.f32.gmra.mxu0 %v169
    %v264 = vpop.f32.mrf.mxu0
    %v265 = vadd.f32 %v191, %v264
    %v266 = vpop.f32.mrf.mxu0
    %267 = vdwg.mxu0
    %268 = vst [vmem:[%s5] sm:$0xff] %v260
    %269 = vst [vmem:[%s5 + $0x8] sm:$0xff] %v265
    // Predicated region
    $region34: #{causal_encoder_forward.1} parent=1 // pred_check
      _
    $region35: #{causal_encoder_forward.1} parent=1 // pred_check_branch
      %271 = sbr.rel (0) target = $region37
    $region36: #{causal_encoder_forward.1} parent=1 // pred_region
      _
    $region37: #{causal_encoder_forward.1} parent=1 // pred_fallthru
      _
    // Predicated region
    $region38: #{causal_encoder_forward.1} parent=1 // pred_check
      _
    $region39: #{causal_encoder_forward.1} parent=1 // pred_check_branch
      %273 = sbr.rel (0) target = $region41
    $region40: #{causal_encoder_forward.1} parent=1 // pred_region
      _
    $region41: #{causal_encoder_forward.1} parent=1 // pred_fallthru
      _
    %274 = vsyncpa [#allocation3], 1
    %275 = vsyncpa [#allocation5], 1

</llo_original>
